<compile_context>
chip_gen: v5e
topology: v5e:2x2
jax: 0.10.0
libtpu: 0.0.40
codegen_flags: <defaults>
</compile_context>

<pallas_src>
from functools import partial
from typing import Tuple

import jax
import jax.numpy as jnp
from jax.experimental import pallas as pl
from jax.experimental.pallas import tpu as pltpu


def _moe_kernel(x_ref, wcat_ref, b1_ref, w2_ref, b2_ref, sel_ref,
                outgate_ref, l2_ref, *, num_experts, d_hidden, d_out):
    """Fused MoE forward for one batch tile.

    x_ref      : (TB, D)          f32 input activations (cast to bf16 in-kernel)
    wcat_ref   : (D, E*H + E)     bf16 [all experts' W1 | gating Wg], fused
    b1_ref     : (1, E*H)         f32 fused first-layer biases
    w2_ref     : (E*H, E*O)       bf16 block-diagonal second-layer weights
    b2_ref     : (1, E*O)         f32 fused second-layer biases
    sel_ref    : (E*O, 128)       f32 0/1 selector (column e sums expert e's lanes)
    outgate_ref: (TB, O + E)      f32 [mixture output | softmax gate]
    l2_ref     : (1, 128)         f32 per-expert L2 partial sums (lanes >= E are 0)
    """
    E, H, O = num_experts, d_hidden, d_out
    EH = E * H

    x = x_ref[...].astype(jnp.bfloat16)                               # (TB, D)

    # --- Gating + all first layers in ONE lane-dense MXU pass. ---
    z = jnp.dot(x, wcat_ref[...], preferred_element_type=jnp.float32)  # (TB, EH+E)
    logits = z[:, EH:]                                                 # (TB, E) lane-aligned @256
    h = jnp.maximum(z[:, :EH] + b1_ref[...], 0.0)                      # (TB, EH) f32

    # Softmax gate (f32 math, EUP reciprocal).
    m = jnp.max(logits, axis=-1, keepdims=True)
    p = jnp.exp(logits - m)
    gate = p * pl.reciprocal(jnp.sum(p, axis=-1, keepdims=True), approx=True)

    # --- All experts' second layers in ONE block-diagonal MXU pass. ---
    y_all = jnp.dot(h.astype(jnp.bfloat16), w2_ref[...],
                    preferred_element_type=jnp.float32) + b2_ref[...]   # (TB, E*O) f32

    # Gated mixture: E static-lane-slice VPU FMAs (E is small & static).
    acc = gate[:, 0:1] * y_all[:, 0:O]
    for e in range(1, E):
        acc = acc + gate[:, e:e + 1] * y_all[:, e * O:(e + 1) * O]

    # Per-expert L2 partial sums: sublane reduce + one tiny MXU op.
    col_sums = jnp.sum(y_all * y_all, axis=0, keepdims=True)           # (1, E*O)
    l2_ref[...] = jnp.dot(col_sums, sel_ref[...],
                          preferred_element_type=jnp.float32)           # (1, 128) lane-dense

    # Consolidated per-row outputs (single output buffer).
    outgate_ref[:, 0:O] = acc
    outgate_ref[:, O:O + E] = gate


@partial(jax.jit, static_argnames=("num_experts", "d_hidden", "d_out"))
def moe_forward(x, wcat, b1_all, w2_blk, b2_all, sel_pad, *,
                num_experts, d_hidden, d_out):
    """Pallas MoE forward. Returns (final_output, expert_weights, l2_losses[(E,)])."""
    B, D = x.shape
    E, H, O = num_experts, d_hidden, d_out

    TB = B if B <= 256 else 256
    # TODO(synk): pad the batch when B is not a multiple of the batch tile.
    assert B % TB == 0, "batch must be divisible by the batch tile"
    num_tiles = B // TB

    kernel = partial(_moe_kernel, num_experts=E, d_hidden=H, d_out=O)

    outgate, l2_pad = pl.pallas_call(
        kernel,
        out_shape=(
            jax.ShapeDtypeStruct((B, O + E), jnp.float32),       # [output | gate]
            jax.ShapeDtypeStruct((num_tiles, 128), jnp.float32),  # per-tile L2 sums
        ),
        grid=(num_tiles,),
        in_specs=[
            pl.BlockSpec((TB, D), lambda i: (i, 0)),             # x: batch-tiled
            pl.BlockSpec((D, E * H + E), lambda i: (0, 0)),      # fused W1|Wg (resident)
            pl.BlockSpec((1, E * H), lambda i: (0, 0)),          # b1 (resident)
            pl.BlockSpec((E * H, E * O), lambda i: (0, 0)),      # block-diag W2 (resident)
            pl.BlockSpec((1, E * O), lambda i: (0, 0)),          # b2 (resident)
            pl.BlockSpec((E * O, 128), lambda i: (0, 0)),        # L2 selector (resident)
        ],
        out_specs=(
            pl.BlockSpec((TB, O + E), lambda i: (i, 0)),
            pl.BlockSpec((1, 128), lambda i: (i, 0)),
        ),
        compiler_params=pltpu.CompilerParams(
            dimension_semantics=("parallel",)),                  # megacore batch split on v7x
    )(x, wcat, b1_all, w2_blk, b2_all, sel_pad)

    out = outgate[:, :O]
    gate = outgate[:, O:O + E]
    l2 = jnp.sum(l2_pad, axis=0)[:E] * (1.0 / (B * O))
    return out, gate, l2


class PallasMoE:
    """Concrete realization of MoEInterface on top of the Pallas kernel."""

    def __init__(self, key, num_experts=4, d_in=32, d_hidden=64, d_out=32):
        self._num_experts = num_experts
        self._d_hidden = d_hidden
        self._d_out = d_out
        E, D, H, O = num_experts, d_in, d_hidden, d_out

        k = jax.random.split(key, 3)
        s = 0.02
        # Raw f32 parameters (kept for the pure-JAX reference / training).
        self.wg = s * jax.random.normal(k[0], (D, E), jnp.float32)
        self.w1 = s * jax.random.normal(k[1], (E, D, H), jnp.float32)
        self.b1 = jnp.zeros((E, 1, H), jnp.float32)
        self.w2 = s * jax.random.normal(k[2], (E, H, O), jnp.float32)
        self.b2 = jnp.zeros((E, 1, O), jnp.float32)
        self.loss_components = {}

        # --- Layout plumbing hoisted to init (done ONCE, not per forward). ---
        w1_all = jnp.transpose(self.w1, (1, 0, 2)).reshape(D, E * H)       # (D, E*H)
        self._wcat_bf = jnp.concatenate([w1_all, self.wg], axis=1).astype(jnp.bfloat16)
        self._b1_all = self.b1.reshape(1, E * H)                            # f32
        w2_blk = jnp.zeros((E * H, E * O), jnp.float32)
        for e in range(E):
            w2_blk = w2_blk.at[e * H:(e + 1) * H, e * O:(e + 1) * O].set(self.w2[e])
        self._w2_blk_bf = w2_blk.astype(jnp.bfloat16)                       # block-diagonal
        self._b2_all = self.b2.reshape(1, E * O)                            # f32
        sel = jnp.zeros((E * O, 128), jnp.float32)                          # L2 lane-sum selector
        for e in range(E):
            sel = sel.at[e * O:(e + 1) * O, e].set(1.0)
        self._sel_pad = sel

    def forward(self, x, labels=None) -> Tuple[jnp.ndarray, jnp.ndarray, jnp.ndarray]:
        # TODO(synk): `labels`-guided routing is unspecified by the abstract
        # interface; plain softmax routing is used.
        # Per-expert L2 losses are returned as one stacked (E,) array (stands in
        # for the interface's List[Tensor]; avoids E tiny device slices).
        return moe_forward(
            x, self._wcat_bf, self._b1_all, self._w2_blk_bf, self._b2_all,
            self._sel_pad, num_experts=self._num_experts,
            d_hidden=self._d_hidden, d_out=self._d_out)

    def compute_loss(self, final_output, target, expert_weights, expert_l2_losses):
        # Glue (plain JAX): MSE + load-balance (importance variance) + L2 regularization.
        mse = jnp.mean((final_output - target) ** 2)
        importance = jnp.mean(expert_weights, axis=0)
        balance = jnp.var(importance) * self._num_experts
        l2 = jnp.mean(jnp.asarray(expert_l2_losses))
        # Per perf review: no float() host syncs here; keep device scalars (log lazily).
        self.loss_components = {"mse": mse, "balance": balance, "l2": l2}
        return mse + 0.01 * balance + 1e-4 * l2

    @property
    def num_experts(self) -> int:
        return self._num_experts


def _reference_forward(x, wg, w1, b1, w2, b2):
    """Pure-JAX reference using the same bf16 operand / f32 accumulate recipe."""
    xb = x.astype(jnp.bfloat16)
    logits = jnp.dot(xb, wg.astype(jnp.bfloat16), preferred_element_type=jnp.float32)
    gate = jax.nn.softmax(logits, axis=-1)
    E = w1.shape[0]
    out = 0.0
    l2s = []
    for e in range(E):
        h = jnp.maximum(
            jnp.dot(xb, w1[e].astype(jnp.bfloat16),
                    preferred_element_type=jnp.float32) + b1[e], 0.0)
        y = jnp.dot(h.astype(jnp.bfloat16), w2[e].astype(jnp.bfloat16),
                    preferred_element_type=jnp.float32) + b2[e]
        l2s.append(jnp.mean(y * y))
        out = out + gate[:, e:e + 1] * y
    return out, gate, jnp.stack(l2s)


if __name__ == "__main__":
    key = jax.random.PRNGKey(0)
    kx, kp = jax.random.split(key)

    B, D, H, O, E = 8, 32, 64, 32, 4
    model = PallasMoE(kp, num_experts=E, d_in=D, d_hidden=H, d_out=O)
    x = jax.random.normal(kx, (B, D), jnp.float32)

    out, gate, l2 = model.forward(x)
    jax.block_until_ready((out, gate, l2))

    assert out.shape == (B, O) and gate.shape == (B, E) and l2.shape == (E,)

    # Correctness check against a pure-JAX reference (same bf16/f32 recipe;
    # gate tolerance accounts for the approx EUP reciprocal in the softmax).
    ref_out, ref_gate, ref_l2 = _reference_forward(
        x, model.wg, model.w1, model.b1, model.w2, model.b2)
    assert jnp.allclose(gate, ref_gate, atol=5e-3, rtol=3e-2), "gate mismatch"
    assert jnp.allclose(out, ref_out, atol=5e-4, rtol=3e-2), "output mismatch"
    assert jnp.allclose(l2, ref_l2, atol=1e-6, rtol=1e-2), "l2 mismatch"

    # Exercise compute_loss glue path (no host syncs inside).
    target = jax.random.normal(jax.random.PRNGKey(1), (B, O), jnp.float32)
    loss = model.compute_loss(out, target, gate, l2)
    jax.block_until_ready(loss)

    print("KERNEL_OK")
</pallas_src>

<mosaic_0001>
module attributes {stable_mosaic.version = 11 : i64} {
  func.func @_moe_kernel(%arg0: i32, %arg1: memref<8x32xf32, #tpu.memory_space<vmem>>, %arg2: memref<32x260xbf16, #tpu.memory_space<vmem>>, %arg3: memref<1x256xf32, #tpu.memory_space<vmem>>, %arg4: memref<256x128xbf16, #tpu.memory_space<vmem>>, %arg5: memref<1x128xf32, #tpu.memory_space<vmem>>, %arg6: memref<128x128xf32, #tpu.memory_space<vmem>>, %arg7: memref<8x36xf32, #tpu.memory_space<vmem>>, %arg8: memref<1x128xf32, #tpu.memory_space<vmem>>) attributes {dimension_semantics = [#tpu.dimension_semantics<parallel>], iteration_bounds = array<i64: 1>, scalar_prefetch = 0 : i64, scratch_operands = 0 : i64, tpu.core_type = #tpu.core_type<tc>, window_params = [{transform_indices = @transform_0, window_bounds = array<i64: 8, 32>}, {pipeline_mode = #tpu.pipeline_mode<synchronous>, transform_indices = @transform_1, window_bounds = array<i64: 32, 260>}, {pipeline_mode = #tpu.pipeline_mode<synchronous>, transform_indices = @transform_2, window_bounds = array<i64: 1, 256>}, {pipeline_mode = #tpu.pipeline_mode<synchronous>, transform_indices = @transform_3, window_bounds = array<i64: 256, 128>}, {pipeline_mode = #tpu.pipeline_mode<synchronous>, transform_indices = @transform_4, window_bounds = array<i64: 1, 128>}, {pipeline_mode = #tpu.pipeline_mode<synchronous>, transform_indices = @transform_5, window_bounds = array<i64: 128, 128>}, {transform_indices = @transform_6, window_bounds = array<i64: 8, 36>}, {transform_indices = @transform_7, window_bounds = array<i64: 1, 128>}]} {
    %c0 = arith.constant 0 : index
    %c0_0 = arith.constant 0 : index
    %0 = vector.load %arg1[%c0, %c0_0] : memref<8x32xf32, #tpu.memory_space<vmem>>, vector<8x32xf32>
    %1 = arith.truncf %0 : vector<8x32xf32> to vector<8x32xbf16>
    %c0_1 = arith.constant 0 : index
    %c0_2 = arith.constant 0 : index
    %2 = vector.load %arg2[%c0_1, %c0_2] : memref<32x260xbf16, #tpu.memory_space<vmem>>, vector<32x260xbf16>
    %cst = arith.constant dense<0.000000e+00> : vector<8x260xf32>
    %3 = tpu.matmul %1, %2, %cst {dimension_numbers = #tpu.dot_dimension_numbers<[1], [0], [0], [1], [0, 0, 1, 1], [], []>} : vector<8x32xbf16>, vector<32x260xbf16>, vector<8x260xf32> -> vector<8x260xf32>
    %4 = vector.extract_strided_slice %3 {offsets = [0, 256], sizes = [8, 4], strides = [1, 1]} : vector<8x260xf32> to vector<8x4xf32>
    %5 = vector.extract_strided_slice %3 {offsets = [0, 0], sizes = [8, 256], strides = [1, 1]} : vector<8x260xf32> to vector<8x256xf32>
    %c0_3 = arith.constant 0 : index
    %c0_4 = arith.constant 0 : index
    %6 = vector.load %arg3[%c0_3, %c0_4] : memref<1x256xf32, #tpu.memory_space<vmem>>, vector<1x256xf32>
    %7 = vector.broadcast %6 : vector<1x256xf32> to vector<8x256xf32>
    %8 = arith.addf %5, %7 : vector<8x256xf32>
    %cst_5 = arith.constant 0.000000e+00 : f32
    %9 = vector.broadcast %cst_5 : f32 to vector<8x256xf32>
    %10 = arith.maximumf %8, %9 : vector<8x256xf32>
    %cst_6 = arith.constant dense<0xFF800000> : vector<8xf32>
    %11 = vector.multi_reduction <maximumf>, %4, %cst_6 [1] : vector<8x4xf32> to vector<8xf32>
    %12 = vector.shape_cast %11 : vector<8xf32> to vector<8x1xf32>
    %13 = vector.broadcast %12 : vector<8x1xf32> to vector<8x4xf32>
    %14 = arith.subf %4, %13 : vector<8x4xf32>
    %15 = math.exp %14 : vector<8x4xf32>
    %cst_7 = arith.constant dense<0.000000e+00> : vector<8xf32>
    %16 = vector.multi_reduction <add>, %15, %cst_7 [1] : vector<8x4xf32> to vector<8xf32>
    %17 = vector.shape_cast %16 : vector<8xf32> to vector<8x1xf32>
    %18 = tpu.reciprocal %17 {approx = true} : vector<8x1xf32> -> vector<8x1xf32>
    %19 = vector.broadcast %18 : vector<8x1xf32> to vector<8x4xf32>
    %20 = arith.mulf %15, %19 : vector<8x4xf32>
    %21 = arith.truncf %10 : vector<8x256xf32> to vector<8x256xbf16>
    %c0_8 = arith.constant 0 : index
    %c0_9 = arith.constant 0 : index
    %22 = vector.load %arg4[%c0_8, %c0_9] : memref<256x128xbf16, #tpu.memory_space<vmem>>, vector<256x128xbf16>
    %cst_10 = arith.constant dense<0.000000e+00> : vector<8x128xf32>
    %23 = tpu.matmul %21, %22, %cst_10 {dimension_numbers = #tpu.dot_dimension_numbers<[1], [0], [0], [1], [0, 0, 1, 1], [], []>} : vector<8x256xbf16>, vector<256x128xbf16>, vector<8x128xf32> -> vector<8x128xf32>
    %c0_11 = arith.constant 0 : index
    %c0_12 = arith.constant 0 : index
    %24 = vector.load %arg5[%c0_11, %c0_12] : memref<1x128xf32, #tpu.memory_space<vmem>>, vector<1x128xf32>
    %25 = vector.broadcast %24 : vector<1x128xf32> to vector<8x128xf32>
    %26 = arith.addf %23, %25 : vector<8x128xf32>
    %27 = vector.extract_strided_slice %20 {offsets = [0, 0], sizes = [8, 1], strides = [1, 1]} : vector<8x4xf32> to vector<8x1xf32>
    %28 = vector.extract_strided_slice %26 {offsets = [0, 0], sizes = [8, 32], strides = [1, 1]} : vector<8x128xf32> to vector<8x32xf32>
    %29 = vector.broadcast %27 : vector<8x1xf32> to vector<8x32xf32>
    %30 = arith.mulf %29, %28 : vector<8x32xf32>
    %31 = vector.extract_strided_slice %20 {offsets = [0, 1], sizes = [8, 1], strides = [1, 1]} : vector<8x4xf32> to vector<8x1xf32>
    %32 = vector.extract_strided_slice %26 {offsets = [0, 32], sizes = [8, 32], strides = [1, 1]} : vector<8x128xf32> to vector<8x32xf32>
    %33 = vector.broadcast %31 : vector<8x1xf32> to vector<8x32xf32>
    %34 = arith.mulf %33, %32 : vector<8x32xf32>
    %35 = arith.addf %30, %34 : vector<8x32xf32>
    %36 = vector.extract_strided_slice %20 {offsets = [0, 2], sizes = [8, 1], strides = [1, 1]} : vector<8x4xf32> to vector<8x1xf32>
    %37 = vector.extract_strided_slice %26 {offsets = [0, 64], sizes = [8, 32], strides = [1, 1]} : vector<8x128xf32> to vector<8x32xf32>
    %38 = vector.broadcast %36 : vector<8x1xf32> to vector<8x32xf32>
    %39 = arith.mulf %38, %37 : vector<8x32xf32>
    %40 = arith.addf %35, %39 : vector<8x32xf32>
    %41 = vector.extract_strided_slice %20 {offsets = [0, 3], sizes = [8, 1], strides = [1, 1]} : vector<8x4xf32> to vector<8x1xf32>
    %42 = vector.extract_strided_slice %26 {offsets = [0, 96], sizes = [8, 32], strides = [1, 1]} : vector<8x128xf32> to vector<8x32xf32>
    %43 = vector.broadcast %41 : vector<8x1xf32> to vector<8x32xf32>
    %44 = arith.mulf %43, %42 : vector<8x32xf32>
    %45 = arith.addf %40, %44 : vector<8x32xf32>
    %46 = arith.mulf %26, %26 : vector<8x128xf32>
    %cst_13 = arith.constant dense<0.000000e+00> : vector<128xf32>
    %47 = vector.multi_reduction <add>, %46, %cst_13 [0] : vector<8x128xf32> to vector<128xf32>
    %48 = vector.shape_cast %47 : vector<128xf32> to vector<1x128xf32>
    %c0_14 = arith.constant 0 : index
    %c0_15 = arith.constant 0 : index
    %49 = vector.load %arg6[%c0_14, %c0_15] : memref<128x128xf32, #tpu.memory_space<vmem>>, vector<128x128xf32>
    %cst_16 = arith.constant dense<0.000000e+00> : vector<1x128xf32>
    %50 = tpu.matmul %48, %49, %cst_16 {dimension_numbers = #tpu.dot_dimension_numbers<[1], [0], [0], [1], [0, 0, 1, 1], [], []>} : vector<1x128xf32>, vector<128x128xf32>, vector<1x128xf32> -> vector<1x128xf32>
    %c0_17 = arith.constant 0 : index
    %c0_18 = arith.constant 0 : index
    %51 = vector.load %arg8[%c0_17, %c0_18] : memref<1x128xf32, #tpu.memory_space<vmem>>, vector<1x128xf32>
    tpu.vector_store %arg8[%c0_17, %c0_18], %50 {strides = array<i32>} : memref<1x128xf32, #tpu.memory_space<vmem>>, vector<1x128xf32>,
    %c0_19 = arith.constant 0 : index
    %c0_20 = arith.constant 0 : index
    %52 = vector.load %arg7[%c0_19, %c0_20] : memref<8x36xf32, #tpu.memory_space<vmem>>, vector<8x32xf32>
    tpu.vector_store %arg7[%c0_19, %c0_20], %45 {strides = array<i32>} : memref<8x36xf32, #tpu.memory_space<vmem>>, vector<8x32xf32>,
    %c0_21 = arith.constant 0 : index
    %c32 = arith.constant 32 : index
    %53 = vector.load %arg7[%c0_21, %c32] : memref<8x36xf32, #tpu.memory_space<vmem>>, vector<8x4xf32>
    tpu.vector_store %arg7[%c0_21, %c32], %20 {strides = array<i32>} : memref<8x36xf32, #tpu.memory_space<vmem>>, vector<8x4xf32>,
    return
  }
  func.func @transform_0(%arg0: i32) -> (i32, i32) {
    %c0_i32 = arith.constant 0 : i32
    %c0_i32_0 = arith.constant 0 : i32
    return %arg0, %c0_i32 : i32, i32
  }
  func.func @transform_1(%arg0: i32) -> (i32, i32) {
    %c0_i32 = arith.constant 0 : i32
    %c0_i32_0 = arith.constant 0 : i32
    %c0_i32_1 = arith.constant 0 : i32
    return %c0_i32, %c0_i32_0 : i32, i32
  }
  func.func @transform_2(%arg0: i32) -> (i32, i32) {
    %c0_i32 = arith.constant 0 : i32
    %c0_i32_0 = arith.constant 0 : i32
    %c0_i32_1 = arith.constant 0 : i32
    return %c0_i32, %c0_i32_0 : i32, i32
  }
  func.func @transform_3(%arg0: i32) -> (i32, i32) {
    %c0_i32 = arith.constant 0 : i32
    %c0_i32_0 = arith.constant 0 : i32
    %c0_i32_1 = arith.constant 0 : i32
    return %c0_i32, %c0_i32_0 : i32, i32
  }
  func.func @transform_4(%arg0: i32) -> (i32, i32) {
    %c0_i32 = arith.constant 0 : i32
    %c0_i32_0 = arith.constant 0 : i32
    %c0_i32_1 = arith.constant 0 : i32
    return %c0_i32, %c0_i32_0 : i32, i32
  }
  func.func @transform_5(%arg0: i32) -> (i32, i32) {
    %c0_i32 = arith.constant 0 : i32
    %c0_i32_0 = arith.constant 0 : i32
    %c0_i32_1 = arith.constant 0 : i32
    return %c0_i32, %c0_i32_0 : i32, i32
  }
  func.func @transform_6(%arg0: i32) -> (i32, i32) {
    %c0_i32 = arith.constant 0 : i32
    %c0_i32_0 = arith.constant 0 : i32
    return %arg0, %c0_i32 : i32, i32
  }
  func.func @transform_7(%arg0: i32) -> (i32, i32) {
    %c0_i32 = arith.constant 0 : i32
    %c0_i32_0 = arith.constant 0 : i32
    return %arg0, %c0_i32 : i32, i32
  }
}

</mosaic_0001>

<llo_original>
// kernel: moe_forward.1
$region0: #{moe_forward.1}
  #allocation0 [shape = 'u32[]', space=smem, size = 0x4, offset = 0x4, fixed_abs, tag = 'smem constant byte address 0x4 - core index']
  #allocation1 [shape = 'u32[72,128]{1,0:T(1,128)}', space=vmem, size = 0x9000, scoped, tag = 'internal scratch']
  %s0 = inlined_call_operand.hbm [shape: f32[8,32], index: 0, kind: input, shape index: {}]
  %s1 = inlined_call_operand.hbm [shape: bf16[32,260], index: 1, kind: input, shape index: {}]
  %s2 = inlined_call_operand.hbm [shape: f32[1,256], index: 2, kind: input, shape index: {}]
  %s3 = inlined_call_operand.hbm [shape: bf16[256,128], index: 3, kind: input, shape index: {}]
  %s4 = inlined_call_operand.vmem [shape: f32[1,128], index: 4, kind: input, shape index: {}]
  %s5 = inlined_call_operand.hbm [shape: f32[128,128], index: 5, kind: input, shape index: {}]
  %s6 = inlined_call_operand.vmem [shape: f32[8,36], index: 6, kind: output, shape index: {0}]
  %s7 = inlined_call_operand.vmem [shape: f32[1,128], index: 7, kind: output, shape index: {1}]
  %8 = xla_tuple %s6, %s7
  %s9 = sld [smem:[#allocation0]]
  $region62: #{moe_forward.1} parent=0
    _
  %s11 = ssub.s32 1, %s9
  %s12 = scalar_select 0, %s11, %s9
  $region1: #{moe_forward.1} parent=0
    #allocation2 [shape = 'u8[4096]{0}', space=vmem, size = 0x1000, scoped, tag = 'input window, operand 0, single buffered']
    #allocation3 [shape = 's32[1]{0}', space=sflag, size = 0x4, scoped, tag = 'scoped memory for moe_forward.1']
    #allocation4 [shape = 'u8[24576]{0}', space=vmem, size = 0x6000, scoped, tag = 'input window, operand 1, single buffered']
    #allocation5 [shape = 's32[1]{0}', space=sflag, size = 0x4, scoped, tag = 'scoped memory for moe_forward.1']
    #allocation6 [shape = 'u8[1024]{0}', space=vmem, size = 0x400, scoped, tag = 'input window, operand 2, single buffered']
    #allocation7 [shape = 'u8[65536]{0}', space=vmem, size = 0x10000, scoped, tag = 'input window, operand 3, single buffered']
    #allocation8 [shape = 's32[1]{0}', space=sflag, size = 0x4, scoped, tag = 'scoped memory for moe_forward.1']
    #allocation9 [shape = 'u8[65536]{0}', space=vmem, size = 0x10000, scoped, tag = 'input window, operand 5, single buffered']
    %13 = vsyncpa [#allocation3], 0
    %14 = vsyncpa [#allocation5], 0
    %15 = vsyncpa [#allocation8], 0
    // Predicated region
    $region2: #{moe_forward.1} parent=1 // pred_check
      _
    $region3: #{moe_forward.1} parent=1 // pred_check_branch
      %17 = sbr.rel (0) target = $region5
    $region4: #{moe_forward.1} parent=1 // pred_region
      %19 = vsyncadd [#allocation3], 0
      %s21 = sshll.u32 %s0, 4
      %s22 = int_to_ptr.hbm [resolvable:$true] %s21
      %s23 = sshll.u32 [#allocation2], 4
      %s24 = int_to_ptr.vmem [resolvable:$true] %s23
      %26 = dma.hbm_to_vmem [thread:$0]  %s22, 128, %s24, [#allocation3]
    $region5: #{moe_forward.1} parent=1 // pred_fallthru
      _
    // Predicated region
    $region6: #{moe_forward.1} parent=1 // pred_check
      _
    $region7: #{moe_forward.1} parent=1 // pred_check_branch
      %28 = sbr.rel (0) target = $region9
    $region8: #{moe_forward.1} parent=1 // pred_region
      %30 = vsyncadd [#allocation5], 0
      %s31 = sshll.u32 %s1, 4
      %s32 = int_to_ptr.hbm [resolvable:$true] %s31
      %s33 = sshll.u32 [#allocation4], 4
      %s34 = int_to_ptr.vmem [resolvable:$true] %s33
      %39 = dma.hbm_to_vmem [thread:$0]  %s32, 768, %s34, [#allocation5], 192, 192, 12
    $region9: #{moe_forward.1} parent=1 // pred_fallthru
      _
    // Predicated region
    $region10: #{moe_forward.1} parent=1 // pred_check
      _
    $region11: #{moe_forward.1} parent=1 // pred_check_branch
      %41 = sbr.rel (0) target = $region13
    $region12: #{moe_forward.1} parent=1 // pred_region
      %43 = vsyncadd [#allocation5], 0
      %s45 = sshll.u32 %s2, 4
      %s46 = int_to_ptr.hbm [resolvable:$true] %s45
      %s47 = sshll.u32 [#allocation6], 4
      %s48 = int_to_ptr.vmem [resolvable:$true] %s47
      %50 = dma.hbm_to_vmem [thread:$0]  %s46, 32, %s48, [#allocation5]
    $region13: #{moe_forward.1} parent=1 // pred_fallthru
      _
    // Predicated region
    $region14: #{moe_forward.1} parent=1 // pred_check
      _
    $region15: #{moe_forward.1} parent=1 // pred_check_branch
      %52 = sbr.rel (0) target = $region17
    $region16: #{moe_forward.1} parent=1 // pred_region
      %54 = vsyncadd [#allocation8], 0
      %s55 = sshll.u32 %s3, 4
      %s56 = int_to_ptr.hbm [resolvable:$true] %s55
      %s57 = sshll.u32 [#allocation7], 4
      %s58 = int_to_ptr.vmem [resolvable:$true] %s57
      %63 = dma.hbm_to_vmem [thread:$0]  %s56, 2048, %s58, [#allocation8], 64, 64, 4
    $region17: #{moe_forward.1} parent=1 // pred_fallthru
      _
    // Predicated region
    $region18: #{moe_forward.1} parent=1 // pred_check
      _
    $region19: #{moe_forward.1} parent=1 // pred_check_branch
      %65 = sbr.rel (0) target = $region21
    $region20: #{moe_forward.1} parent=1 // pred_region
      _
    $region21: #{moe_forward.1} parent=1 // pred_fallthru
      _
    // Predicated region
    $region22: #{moe_forward.1} parent=1 // pred_check
      _
    $region23: #{moe_forward.1} parent=1 // pred_check_branch
      %67 = sbr.rel (0) target = $region25
    $region24: #{moe_forward.1} parent=1 // pred_region
      %69 = vsyncadd [#allocation8], 0
      %s70 = sshll.u32 %s5, 4
      %s71 = int_to_ptr.hbm [resolvable:$true] %s70
      %s72 = sshll.u32 [#allocation9], 4
      %s73 = int_to_ptr.vmem [resolvable:$true] %s72
      %78 = dma.hbm_to_vmem [thread:$0]  %s71, 2048, %s73, [#allocation8], 128, 128, 8
    $region25: #{moe_forward.1} parent=1 // pred_fallthru
      _
    // Predicated region
    $region26: #{moe_forward.1} parent=1 // pred_check
      _
    $region27: #{moe_forward.1} parent=1 // pred_check_branch
      %80 = sbr.rel (0) target = $region29
    $region28: #{moe_forward.1} parent=1 // pred_region
      %82 = dma.done [#allocation3], 128
    $region29: #{moe_forward.1} parent=1 // pred_fallthru
      _
    // Predicated region
    $region30: #{moe_forward.1} parent=1 // pred_check
      _
    $region31: #{moe_forward.1} parent=1 // pred_check_branch
      %84 = sbr.rel (0) target = $region33
    $region32: #{moe_forward.1} parent=1 // pred_region
      %86 = dma.done [#allocation5], 768
    $region33: #{moe_forward.1} parent=1 // pred_fallthru
      _
    // Predicated region
    $region34: #{moe_forward.1} parent=1 // pred_check
      _
    $region35: #{moe_forward.1} parent=1 // pred_check_branch
      %88 = sbr.rel (0) target = $region37
    $region36: #{moe_forward.1} parent=1 // pred_region
      %90 = dma.done [#allocation5], 32
    $region37: #{moe_forward.1} parent=1 // pred_fallthru
      _
    // Predicated region
    $region38: #{moe_forward.1} parent=1 // pred_check
      _
    $region39: #{moe_forward.1} parent=1 // pred_check_branch
      %92 = sbr.rel (0) target = $region41
    $region40: #{moe_forward.1} parent=1 // pred_region
      %94 = dma.done [#allocation8], 2048
    $region41: #{moe_forward.1} parent=1 // pred_fallthru
      _
    // Predicated region
    $region42: #{moe_forward.1} parent=1 // pred_check
      _
    $region43: #{moe_forward.1} parent=1 // pred_check_branch
      %96 = sbr.rel (0) target = $region45
    $region44: #{moe_forward.1} parent=1 // pred_region
      %98 = dma.done [#allocation8], 2048
    $region45: #{moe_forward.1} parent=1 // pred_fallthru
      _
    %v100 = vld [vmem:[#allocation2] sm:$0xff]
    %v101 = vpack.c.bf16 %v100, %v100
    %v102 = vld [vmem:[#allocation4] sm:$0xff]
    %v103 = vld [vmem:[#allocation4 + $0x8] sm:$0xf]
    %v104 = vld [vmem:[#allocation4 + $0xc] sm:$0xff]
    %v105 = vld [vmem:[#allocation4 + $0x14] sm:$0xf]
    %v106 = vld [vmem:[#allocation4 + $0x18] sm:$0xff]
    %v107 = vld [vmem:[#allocation4 + $0x20] sm:$0xf]
    %v108 = vld [vmem:[#allocation4 + $0x24] sm:$0xff]
    %v109 = vld [vmem:[#allocation4 + $0x2c] sm:$0xf]
    %v118 = vunpack.c.l.b16 %v102
    %v119 = vunpack.c.h.b16 %v102
    %v120 = vunpack.c.l.b16 %v103
    %v121 = vunpack.c.l.b16 %v104
    %v122 = vunpack.c.h.b16 %v104
    %v123 = vunpack.c.l.b16 %v105
    %v124 = vunpack.c.l.b16 %v106
    %v125 = vunpack.c.h.b16 %v106
    %v126 = vunpack.c.l.b16 %v107
    %v127 = vunpack.c.l.b16 %v108
    %v128 = vunpack.c.h.b16 %v108
    %v129 = vunpack.c.l.b16 %v109
    %v130 = vpack.c.b16 %v121, %v118
    %v131 = vpack.c.b16 %v122, %v119
    %v132 = vpack.c.b16 %v123, %v120
    %v133 = vpack.c.b16 %v127, %v124
    %v134 = vpack.c.b16 %v128, %v125
    %v135 = vpack.c.b16 %v129, %v126
    %vm142 = vcmask 261120
    %v144 = vsel %vm142, %v101, 0
    %146 = vmatpush.bf16.msra.mxu0 0
    %147 = vmatpush.bf16.msra.mxu0 0
    %148 = vmatpush.bf16.msra.mxu0 0
    %149 = vmatpush.bf16.msra.mxu0 0
    %150 = vmatpush.bf16.msra.mxu0 0
    %151 = vmatpush.bf16.msra.mxu0 0
    %152 = vmatpush.bf16.msra.mxu0 %v133
    %153 = vmatpush.bf16.msra.mxu0 %v130
    %154 = vmatmul.bf16.gmra.mxu0 %v144
    %v155 = vpop.f32.mrf.mxu0
    %v156 = vadd.f32 0.0, %v155
    %v157 = vpop.f32.mrf.mxu0
    %158 = vdwg.mxu0
    %159 = vmatpush.bf16.msra.mxu0 0
    %160 = vmatpush.bf16.msra.mxu0 0
    %161 = vmatpush.bf16.msra.mxu0 0
    %162 = vmatpush.bf16.msra.mxu0 0
    %163 = vmatpush.bf16.msra.mxu0 0
    %164 = vmatpush.bf16.msra.mxu0 0
    %165 = vmatpush.bf16.msra.mxu0 %v134
    %166 = vmatpush.bf16.msra.mxu0 %v131
    %167 = vmatmul.bf16.gmra.mxu0 %v144
    %v168 = vpop.f32.mrf.mxu0
    %v169 = vadd.f32 0.0, %v168
    %v170 = vpop.f32.mrf.mxu0
    %171 = vdwg.mxu0
    %172 = vmatpush.bf16.msra.mxu0 0
    %173 = vmatpush.bf16.msra.mxu0 0
    %174 = vmatpush.bf16.msra.mxu0 0
    %175 = vmatpush.bf16.msra.mxu0 0
    %176 = vmatpush.bf16.msra.mxu0 0
    %177 = vmatpush.bf16.msra.mxu0 0
    %178 = vmatpush.bf16.msra.mxu0 %v135
    %179 = vmatpush.bf16.msra.mxu0 %v132
    %180 = vmatmul.bf16.gmra.mxu0 %v144
    %v181 = vpop.f32.mrf.mxu0
    %v182 = vadd.f32 0.0, %v181
    %v183 = vpop.f32.mrf.mxu0
    %184 = vdwg.mxu0
    %v185 = vld [vmem:[#allocation6] sm:$0x3]
    %v187 = vperm.slane %v185, 0
    %v188 = vperm.slane %v185, 1
    %v191 = vadd.f32 %v156, %v187
    %v192 = vadd.f32 %v169, %v188
    %v193 = vmax.f32 %v191, 0.0
    %v194 = vmax.f32 %v192, 0.0
    %vm195 = vcmask 31744
    %v196 = vsel %vm195, %v182, -inf
    %197 = vmax.xlane.f32.xlu0 %v196
    %v198 = vpop.xlane.xlu0 %197
    %v199 = vsub.f32 %v182, %v198
    %v200 = vmul.f32 %v199, 1.442695
    %v201 = vpow.pop %v200
    %v202 = vsel %vm195, %v201, 0.0
    %203 = vadd.xlane.f32.xlu0 %v202
    %v204 = vpop.xlane.xlu0 %203
    %v205 = vrcp.pop %v204
    %v206 = vmul.f32 %v201, %v205
    %v207 = vpack.c.bf16 %v193, %v193
    %v208 = vpack.c.bf16 %v194, %v194
    %v209 = vld [vmem:[#allocation7] sm:$0xf]
    %v210 = vld [vmem:[#allocation7 + $0x4] sm:$0xf]
    %v211 = vld [vmem:[#allocation7 + $0x8] sm:$0xf]
    %v212 = vld [vmem:[#allocation7 + $0xc] sm:$0xf]
    %v213 = vld [vmem:[#allocation7 + $0x10] sm:$0xf]
    %v214 = vld [vmem:[#allocation7 + $0x14] sm:$0xf]
    %v215 = vld [vmem:[#allocation7 + $0x18] sm:$0xf]
    %v216 = vld [vmem:[#allocation7 + $0x1c] sm:$0xf]
    %v217 = vld [vmem:[#allocation7 + $0x20] sm:$0xf]
    %v218 = vld [vmem:[#allocation7 + $0x24] sm:$0xf]
    %v219 = vld [vmem:[#allocation7 + $0x28] sm:$0xf]
    %v220 = vld [vmem:[#allocation7 + $0x2c] sm:$0xf]
    %v221 = vld [vmem:[#allocation7 + $0x30] sm:$0xf]
    %v222 = vld [vmem:[#allocation7 + $0x34] sm:$0xf]
    %v223 = vld [vmem:[#allocation7 + $0x38] sm:$0xf]
    %v224 = vld [vmem:[#allocation7 + $0x3c] sm:$0xf]
    %v225 = vld [vmem:[#allocation7 + $0x40] sm:$0xf]
    %v226 = vld [vmem:[#allocation7 + $0x44] sm:$0xf]
    %v227 = vld [vmem:[#allocation7 + $0x48] sm:$0xf]
    %v228 = vld [vmem:[#allocation7 + $0x4c] sm:$0xf]
    %v229 = vld [vmem:[#allocation7 + $0x50] sm:$0xf]
    %v230 = vld [vmem:[#allocation7 + $0x54] sm:$0xf]
    %v231 = vld [vmem:[#allocation7 + $0x58] sm:$0xf]
    %v232 = vld [vmem:[#allocation7 + $0x5c] sm:$0xf]
    %v233 = vld [vmem:[#allocation7 + $0x60] sm:$0xf]
    %v234 = vld [vmem:[#allocation7 + $0x64] sm:$0xf]
    %v235 = vld [vmem:[#allocation7 + $0x68] sm:$0xf]
    %v236 = vld [vmem:[#allocation7 + $0x6c] sm:$0xf]
    %v237 = vld [vmem:[#allocation7 + $0x70] sm:$0xf]
    %v238 = vld [vmem:[#allocation7 + $0x74] sm:$0xf]
    %v239 = vld [vmem:[#allocation7 + $0x78] sm:$0xf]
    %v240 = vld [vmem:[#allocation7 + $0x7c] sm:$0xf]
    %v241 = vld [vmem:[%s4] sm:$0x1]
    %v243 = vperm.slane %v241, 0
    %v277 = vunpack.c.l.b16 %v209
    %v278 = vunpack.c.l.b16 %v210
    %v279 = vunpack.c.l.b16 %v211
    %v280 = vunpack.c.l.b16 %v212
    %v281 = vunpack.c.l.b16 %v213
    %v282 = vunpack.c.l.b16 %v214
    %v283 = vunpack.c.l.b16 %v215
    %v284 = vunpack.c.l.b16 %v216
    %v285 = vunpack.c.l.b16 %v217
    %v286 = vunpack.c.l.b16 %v218
    %v287 = vunpack.c.l.b16 %v219
    %v288 = vunpack.c.l.b16 %v220
    %v289 = vunpack.c.l.b16 %v221
    %v290 = vunpack.c.l.b16 %v222
    %v291 = vunpack.c.l.b16 %v223
    %v292 = vunpack.c.l.b16 %v224
    %v293 = vunpack.c.l.b16 %v225
    %v294 = vunpack.c.l.b16 %v226
    %v295 = vunpack.c.l.b16 %v227
    %v296 = vunpack.c.l.b16 %v228
    %v297 = vunpack.c.l.b16 %v229
    %v298 = vunpack.c.l.b16 %v230
    %v299 = vunpack.c.l.b16 %v231
    %v300 = vunpack.c.l.b16 %v232
    %v301 = vunpack.c.l.b16 %v233
    %v302 = vunpack.c.l.b16 %v234
    %v303 = vunpack.c.l.b16 %v235
    %v304 = vunpack.c.l.b16 %v236
    %v305 = vunpack.c.l.b16 %v237
    %v306 = vunpack.c.l.b16 %v238
    %v307 = vunpack.c.l.b16 %v239
    %v308 = vunpack.c.l.b16 %v240
    %v309 = vpack.c.b16 %v278, %v277
    %v310 = vpack.c.b16 %v280, %v279
    %v311 = vpack.c.b16 %v282, %v281
    %v312 = vpack.c.b16 %v284, %v283
    %v313 = vpack.c.b16 %v286, %v285
    %v314 = vpack.c.b16 %v288, %v287
    %v315 = vpack.c.b16 %v290, %v289
    %v316 = vpack.c.b16 %v292, %v291
    %v317 = vpack.c.b16 %v294, %v293
    %v318 = vpack.c.b16 %v296, %v295
    %v319 = vpack.c.b16 %v298, %v297
    %v320 = vpack.c.b16 %v300, %v299
    %v321 = vpack.c.b16 %v302, %v301
    %v322 = vpack.c.b16 %v304, %v303
    %v323 = vpack.c.b16 %v306, %v305
    %v324 = vpack.c.b16 %v308, %v307
    %341 = vmatpush.bf16.msra.mxu0 %v316
    %342 = vmatpush.bf16.msra.mxu0 %v315
    %343 = vmatpush.bf16.msra.mxu0 %v314
    %344 = vmatpush.bf16.msra.mxu0 %v313
    %345 = vmatpush.bf16.msra.mxu0 %v312
    %346 = vmatpush.bf16.msra.mxu0 %v311
    %347 = vmatpush.bf16.msra.mxu0 %v310
    %348 = vmatpush.bf16.msra.mxu0 %v309
    %349 = vmatmul.bf16.gmra.mxu0 %v207
    %v350 = vpop.f32.mrf.mxu0
    %v351 = vadd.f32 %v243, %v350
    %v352 = vpop.f32.mrf.mxu0
    %353 = vdwg.mxu0
    %354 = vmatpush.bf16.msra.mxu0 %v324
    %355 = vmatpush.bf16.msra.mxu0 %v323
    %356 = vmatpush.bf16.msra.mxu0 %v322
    %357 = vmatpush.bf16.msra.mxu0 %v321
    %358 = vmatpush.bf16.msra.mxu0 %v320
    %359 = vmatpush.bf16.msra.mxu0 %v319
    %360 = vmatpush.bf16.msra.mxu0 %v318
    %361 = vmatpush.bf16.msra.mxu0 %v317
    %362 = vmatmul.bf16.gmra.mxu0 %v208
    %v363 = vpop.f32.mrf.mxu0
    %v364 = vadd.f32 %v351, %v363
    %v365 = vpop.f32.mrf.mxu0
    %366 = vdwg.mxu0
    %368 = vset.pattern.permute.xlu0 0
    %369 = vperm.xlu0 %368, %v206
    %v370 = vpop.permute.xlu0 %369
    %v372 = vmul.f32 %v370, %v364
    %373 = vset.pattern.permute.xlu0 1
    %374 = vperm.xlu0 %373, %v206
    %v375 = vpop.permute.xlu0 %374
    %v377 = vmul.f32 %v375, %v364
    %379 = vrot.lane.b32.xlu0 %v377, 96
    %v380 = vpop.permute.xlu0 %379
    %v382 = vadd.f32 %v372, %v380
    %383 = vset.pattern.permute.xlu0 2
    %384 = vperm.xlu0 %383, %v206
    %v385 = vpop.permute.xlu0 %384
    %v387 = vmul.f32 %v385, %v364
    %389 = vrot.lane.b32.xlu0 %v387, 64
    %v390 = vpop.permute.xlu0 %389
    %v392 = vadd.f32 %v382, %v390
    %393 = vset.pattern.permute.xlu0 3
    %394 = vperm.xlu0 %393, %v206
    %v395 = vpop.permute.xlu0 %394
    %v397 = vmul.f32 %v395, %v364
    %399 = vrot.lane.b32.xlu0 %v397, 32
    %v400 = vpop.permute.xlu0 %399
    %v402 = vadd.f32 %v392, %v400
    %v403 = vmul.f32 %v364, %v364
    %v404 = vrot.slane %v403, 4
    %v405 = vadd.f32 %v403, %v404
    %v406 = vrot.slane %v405, 2
    %v407 = vadd.f32 %v405, %v406
    %v408 = vrot.slane %v407, 1
    %v409 = vadd.f32 %v407, %v408
    %v410 = vld [vmem:[#allocation9] sm:$0xff]
    %v411 = vld [vmem:[#allocation9 + $0x8] sm:$0xff]
    %v412 = vld [vmem:[#allocation9 + $0x10] sm:$0xff]
    %v413 = vld [vmem:[#allocation9 + $0x18] sm:$0xff]
    %v414 = vld [vmem:[#allocation9 + $0x20] sm:$0xff]
    %v415 = vld [vmem:[#allocation9 + $0x28] sm:$0xff]
    %v416 = vld [vmem:[#allocation9 + $0x30] sm:$0xff]
    %v417 = vld [vmem:[#allocation9 + $0x38] sm:$0xff]
    %v418 = vld [vmem:[#allocation9 + $0x40] sm:$0xff]
    %v419 = vld [vmem:[#allocation9 + $0x48] sm:$0xff]
    %v420 = vld [vmem:[#allocation9 + $0x50] sm:$0xff]
    %v421 = vld [vmem:[#allocation9 + $0x58] sm:$0xff]
    %v422 = vld [vmem:[#allocation9 + $0x60] sm:$0xff]
    %v423 = vld [vmem:[#allocation9 + $0x68] sm:$0xff]
    %v424 = vld [vmem:[#allocation9 + $0x70] sm:$0xff]
    %v425 = vld [vmem:[#allocation9 + $0x78] sm:$0xff]
    %426 = vmatpush.msra.mxu0 %v425
    %427 = vmatpush.msra.mxu0 %v424
    %428 = vmatpush.msra.mxu0 %v423
    %429 = vmatpush.msra.mxu0 %v422
    %430 = vmatpush.msra.mxu0 %v421
    %431 = vmatpush.msra.mxu0 %v420
    %432 = vmatpush.msra.mxu0 %v419
    %433 = vmatpush.msra.mxu0 %v418
    %434 = vmatpush.msra.mxu0 %v417
    %435 = vmatpush.msra.mxu0 %v416
    %436 = vmatpush.msra.mxu0 %v415
    %437 = vmatpush.msra.mxu0 %v414
    %438 = vmatpush.msra.mxu0 %v413
    %439 = vmatpush.msra.mxu0 %v412
    %440 = vmatpush.msra.mxu0 %v411
    %441 = vmatpush.msra.mxu0 %v410
    %442 = vmatmul.f32.gmra.mxu0 %v409
    %v443 = vpop.f32.mrf.mxu0
    %v444 = vadd.f32 0.0, %v443
    %445 = vdwg.mxu0
    %446 = vst [vmem:[%s7] sm:$0x1] %v444
    %447 = vst.msk [vmem:[%s6] sm:$0xff] %vm142, %v402
    %448 = vrot.lane.b32.xlu0 %v206, 32
    %v449 = vpop.permute.xlu0 %448
    %vm451 = vcmask 294144
    %452 = vst.msk [vmem:[%s6] sm:$0xff] %vm451, %v449
    // Predicated region
    $region46: #{moe_forward.1} parent=1 // pred_check
      _
    $region47: #{moe_forward.1} parent=1 // pred_check_branch
      %454 = sbr.rel (0) target = $region49
    $region48: #{moe_forward.1} parent=1 // pred_region
      _
    $region49: #{moe_forward.1} parent=1 // pred_fallthru
      _
    // Predicated region
    $region50: #{moe_forward.1} parent=1 // pred_check
      _
    $region51: #{moe_forward.1} parent=1 // pred_check_branch
      %456 = sbr.rel (0) target = $region53
    $region52: #{moe_forward.1} parent=1 // pred_region
      _
    $region53: #{moe_forward.1} parent=1 // pred_fallthru
      _
    // Predicated region
    $region54: #{moe_forward.1} parent=1 // pred_check
      _
    $region55: #{moe_forward.1} parent=1 // pred_check_branch
      %458 = sbr.rel (0) target = $region57
    $region56: #{moe_forward.1} parent=1 // pred_region
      _
    $region57: #{moe_forward.1} parent=1 // pred_fallthru
      _
    // Predicated region
    $region58: #{moe_forward.1} parent=1 // pred_check
      _
    $region59: #{moe_forward.1} parent=1 // pred_check_branch
      %460 = sbr.rel (0) target = $region61
    $region60: #{moe_forward.1} parent=1 // pred_region
      _
    $region61: #{moe_forward.1} parent=1 // pred_fallthru
      _
    %461 = vsyncpa [#allocation3], 1
    %462 = vsyncpa [#allocation5], 1
    %463 = vsyncpa [#allocation8], 1

</llo_original>
